<compile_context>
chip_gen: v7x
topology: tpu7x:2x2x1
jax: 0.10.0
libtpu: 0.0.40
codegen_flags: <defaults>
</compile_context>

<pallas_src>
import functools

import jax
import jax.numpy as jnp
from jax.experimental import pallas as pl
from jax.experimental.pallas import tpu as pltpu


def _kendall3_kernel(total_elems, lv1_ref, lv2_ref, w1_ref, w2_ref,
                     l1_ref, l2_ref, loss_ref, m1_ref, m2_ref,
                     s1_acc, s2_acc):
    # lv*/w*_ref: SMEM (1,) f32 scalars.
    # l1/l2_ref : VMEM (block_m, N) f32 input tiles.
    # loss_ref  : VMEM (block_m, N) f32 output tile (lane-dense, full width).
    # m1/m2_ref : SMEM (1,) f32 scalar means (written once, at last step).
    # s1/s2_acc : VMEM (block_m, N) f32 running partial sums of the raw inputs.
    i = pl.program_id(0)

    @pl.when(i == 0)
    def _init():
        s1_acc[...] = jnp.zeros_like(s1_acc)
        s2_acc[...] = jnp.zeros_like(s2_acc)

    lv1 = lv1_ref[0]
    lv2 = lv2_ref[0]
    w1 = w1_ref[0]
    w2 = w2_ref[0]

    l1 = l1_ref[...]
    l2 = l2_ref[...]

    # Fused elementwise output: tmp1 + tmp2 == w1*l1 + w2*l2 + (lv1 + lv2).
    loss_ref[...] = w1 * l1 + w2 * l2 + (lv1 + lv2)

    # Mean linearity: only accumulate raw sums; one cross-lane reduce at the end.
    s1_acc[...] += l1
    s2_acc[...] += l2

    @pl.when(i == pl.num_programs(0) - 1)
    def _finalize():
        inv_n = 1.0 / total_elems
        m1_ref[0] = w1 * (jnp.sum(s1_acc[...]) * inv_n) + lv1
        m2_ref[0] = w2 * (jnp.sum(s2_acc[...]) * inv_n) + lv2


def _choose_block_m(M, N, itemsize=4, max_tile_bytes=2 << 20):
    """Largest row-block that divides M, is a multiple of 8, and keeps the tile
    under max_tile_bytes (so double-buffered tiles fit all generations' VMEM)."""
    if M * N * itemsize <= max_tile_bytes or M % 8 != 0:
        return M  # single full-array tile (always a legal block shape)
    cap = max(8, (int(max_tile_bytes) // (N * itemsize)) // 8 * 8)
    bm = min(cap, M)
    while bm >= 8:
        if M % bm == 0:
            return bm
        bm -= 8
    return M


def kendall3_forward(log_vars1, log_vars2, loss1, loss2, *, block_m=None):
    """Pallas implementation of kendall3.forward.

    log_vars1, log_vars2: (1,) float32 parameters.
    loss1, loss2: identically-shaped 2D float32 loss tensors.
    Returns (loss, tmp1_mean, tmp2_mean) matching the PyTorch semantics.
    """
    assert loss1.shape == loss2.shape and loss1.ndim == 2
    M, N = loss1.shape
    f32 = jnp.float32
    loss1 = loss1.astype(f32)
    loss2 = loss2.astype(f32)

    lv1 = jnp.reshape(log_vars1.astype(f32), (1,))
    lv2 = jnp.reshape(log_vars2.astype(f32), (1,))
    w1 = jnp.exp(-lv1)   # scalar exp done once in the wrapper, passed via SMEM
    w2 = jnp.exp(-lv2)

    if block_m is None:
        block_m = _choose_block_m(M, N)
    assert M % block_m == 0, "block_m must divide M"
    assert block_m == M or block_m % 8 == 0, "tiled block_m must be a multiple of 8"
    grid = (M // block_m,)

    # 2 inputs + 1 output double-buffered + 2 scratch accumulators, plus headroom.
    tile_bytes = block_m * N * 4
    vmem_limit = int(min(48 * 1024 * 1024,
                         max(16 * 1024 * 1024, 10 * tile_bytes + (1 << 20))))

    kernel = functools.partial(_kendall3_kernel, float(M * N))

    def tile_spec():
        return pl.BlockSpec((block_m, N), lambda i: (i, 0))

    def smem_spec():
        return pl.BlockSpec(memory_space=pltpu.MemorySpace.SMEM)

    loss, m1, m2 = pl.pallas_call(
        kernel,
        out_shape=(
            jax.ShapeDtypeStruct((M, N), f32),  # elementwise loss
            jax.ShapeDtypeStruct((1,), f32),    # tmp1.mean()
            jax.ShapeDtypeStruct((1,), f32),    # tmp2.mean()
        ),
        grid=grid,
        in_specs=[
            smem_spec(), smem_spec(), smem_spec(), smem_spec(),  # lv1, lv2, w1, w2
            tile_spec(), tile_spec(),                            # loss1, loss2
        ],
        out_specs=(
            tile_spec(),   # loss tiles (lane-dense, full width N)
            smem_spec(),   # mean1 (written only at last grid step)
            smem_spec(),   # mean2
        ),
        scratch_shapes=[
            pltpu.VMEM((block_m, N), f32),  # running sum of loss1 tiles
            pltpu.VMEM((block_m, N), f32),  # running sum of loss2 tiles
        ],
        compiler_params=pltpu.CompilerParams(
            dimension_semantics=("arbitrary",),   # grid axis carries the accumulation
            vmem_limit_bytes=vmem_limit,
        ),
    )(lv1, lv2, w1, w2, loss1, loss2)

    return loss, m1[0], m2[0]


def _reference(log_vars1, log_vars2, loss1, loss2):
    tmp1 = jnp.exp(-log_vars1) * loss1 + log_vars1
    tmp2 = jnp.exp(-log_vars2) * loss2 + log_vars2
    return tmp1 + tmp2, jnp.mean(tmp1), jnp.mean(tmp2)


if __name__ == "__main__":
    key = jax.random.PRNGKey(0)
    k1, k2, k3, k4 = jax.random.split(key, 4)

    # ---- Case 1: module-init parameters (log_vars = 0), tiled grid path ----
    log_vars1 = jnp.zeros((1,), dtype=jnp.float32)
    log_vars2 = jnp.zeros((1,), dtype=jnp.float32)
    M, N = 64, 256
    loss1 = jax.random.uniform(k1, (M, N), dtype=jnp.float32)
    loss2 = jax.random.uniform(k2, (M, N), dtype=jnp.float32)

    out = kendall3_forward(log_vars1, log_vars2, loss1, loss2, block_m=8)  # grid=(8,)
    jax.block_until_ready(out)
    loss, m1, m2 = out
    ref_loss, ref_m1, ref_m2 = _reference(log_vars1, log_vars2, loss1, loss2)
    assert jnp.allclose(loss, ref_loss, atol=1e-5, rtol=1e-5)
    assert jnp.allclose(m1, ref_m1, atol=1e-5, rtol=1e-5)
    assert jnp.allclose(m2, ref_m2, atol=1e-5, rtol=1e-5)

    # ---- Case 2: nonzero parameters, single-tile path at the tiny size ----
    lv1_nz = jnp.array([0.3], dtype=jnp.float32)
    lv2_nz = jnp.array([-0.2], dtype=jnp.float32)
    S, L = 8, 128
    loss1s = jax.random.uniform(k3, (S, L), dtype=jnp.float32)
    loss2s = jax.random.uniform(k4, (S, L), dtype=jnp.float32)

    out2 = kendall3_forward(lv1_nz, lv2_nz, loss1s, loss2s)  # default block_m -> grid=(1,)
    jax.block_until_ready(out2)
    loss_s, m1_s, m2_s = out2
    ref2 = _reference(lv1_nz, lv2_nz, loss1s, loss2s)
    assert jnp.allclose(loss_s, ref2[0], atol=1e-5, rtol=1e-5)
    assert jnp.allclose(m1_s, ref2[1], atol=1e-5, rtol=1e-5)
    assert jnp.allclose(m2_s, ref2[2], atol=1e-5, rtol=1e-5)

    print("KERNEL_OK")
</pallas_src>

<mosaic_0001>
module attributes {stable_mosaic.version = 11 : i64} {
  func.func @_kendall3_kernel(%arg0: i32, %arg1: memref<1xf32, #tpu.memory_space<smem>>, %arg2: memref<1xf32, #tpu.memory_space<smem>>, %arg3: memref<1xf32, #tpu.memory_space<smem>>, %arg4: memref<1xf32, #tpu.memory_space<smem>>, %arg5: memref<8x256xf32, #tpu.memory_space<vmem>>, %arg6: memref<8x256xf32, #tpu.memory_space<vmem>>, %arg7: memref<8x256xf32, #tpu.memory_space<vmem>>, %arg8: memref<1xf32, #tpu.memory_space<smem>>, %arg9: memref<1xf32, #tpu.memory_space<smem>>, %arg10: memref<8x256xf32, #tpu.memory_space<vmem>>, %arg11: memref<8x256xf32, #tpu.memory_space<vmem>>) attributes {dimension_semantics = [#tpu.dimension_semantics<arbitrary>], iteration_bounds = array<i64: 8>, scalar_prefetch = 0 : i64, scratch_operands = 2 : i64, tpu.core_type = #tpu.core_type<tc>, window_params = [{transform_indices = @transform_0, window_bounds = array<i64: 1>}, {transform_indices = @transform_1, window_bounds = array<i64: 1>}, {transform_indices = @transform_2, window_bounds = array<i64: 1>}, {transform_indices = @transform_3, window_bounds = array<i64: 1>}, {transform_indices = @transform_4, window_bounds = array<i64: 8, 256>}, {transform_indices = @transform_5, window_bounds = array<i64: 8, 256>}, {transform_indices = @transform_6, window_bounds = array<i64: 8, 256>}, {transform_indices = @transform_7, window_bounds = array<i64: 1>}, {transform_indices = @transform_8, window_bounds = array<i64: 1>}]} {
    %c0_i32 = arith.constant 0 : i32
    %0 = arith.cmpi eq, %arg0, %c0_i32 : i32
    %1 = arith.extui %0 : i1 to i32
    %c0_i32_0 = arith.constant 0 : i32
    %2 = arith.cmpi ne, %1, %c0_i32_0 : i32
    scf.if %2 {
      %cst = arith.constant 0.000000e+00 : f32
      %27 = vector.broadcast %cst : f32 to vector<8x256xf32>
      %c0_19 = arith.constant 0 : index
      %c0_20 = arith.constant 0 : index
      %28 = vector.load %arg10[%c0_19, %c0_20] : memref<8x256xf32, #tpu.memory_space<vmem>>, vector<8x256xf32>
      tpu.vector_store %arg10[%c0_19, %c0_20], %27 {strides = array<i32>} : memref<8x256xf32, #tpu.memory_space<vmem>>, vector<8x256xf32>,
      %cst_21 = arith.constant 0.000000e+00 : f32
      %29 = vector.broadcast %cst_21 : f32 to vector<8x256xf32>
      %c0_22 = arith.constant 0 : index
      %c0_23 = arith.constant 0 : index
      %30 = vector.load %arg11[%c0_22, %c0_23] : memref<8x256xf32, #tpu.memory_space<vmem>>, vector<8x256xf32>
      tpu.vector_store %arg11[%c0_22, %c0_23], %29 {strides = array<i32>} : memref<8x256xf32, #tpu.memory_space<vmem>>, vector<8x256xf32>,
    } else {
    }
    %c0 = arith.constant 0 : index
    %3 = memref.load %arg1[%c0] : memref<1xf32, #tpu.memory_space<smem>>
    %c0_1 = arith.constant 0 : index
    %4 = memref.load %arg2[%c0_1] : memref<1xf32, #tpu.memory_space<smem>>
    %c0_2 = arith.constant 0 : index
    %5 = memref.load %arg3[%c0_2] : memref<1xf32, #tpu.memory_space<smem>>
    %c0_3 = arith.constant 0 : index
    %6 = memref.load %arg4[%c0_3] : memref<1xf32, #tpu.memory_space<smem>>
    %c0_4 = arith.constant 0 : index
    %c0_5 = arith.constant 0 : index
    %7 = vector.load %arg5[%c0_4, %c0_5] : memref<8x256xf32, #tpu.memory_space<vmem>>, vector<8x256xf32>
    %c0_6 = arith.constant 0 : index
    %c0_7 = arith.constant 0 : index
    %8 = vector.load %arg6[%c0_6, %c0_7] : memref<8x256xf32, #tpu.memory_space<vmem>>, vector<8x256xf32>
    %9 = vector.broadcast %5 : f32 to vector<8x256xf32>
    %10 = arith.mulf %9, %7 : vector<8x256xf32>
    %11 = vector.broadcast %6 : f32 to vector<8x256xf32>
    %12 = arith.mulf %11, %8 : vector<8x256xf32>
    %13 = arith.addf %10, %12 : vector<8x256xf32>
    %14 = arith.addf %3, %4 : f32
    %15 = vector.broadcast %14 : f32 to vector<8x256xf32>
    %16 = arith.addf %13, %15 : vector<8x256xf32>
    %c0_8 = arith.constant 0 : index
    %c0_9 = arith.constant 0 : index
    %17 = vector.load %arg7[%c0_8, %c0_9] : memref<8x256xf32, #tpu.memory_space<vmem>>, vector<8x256xf32>
    tpu.vector_store %arg7[%c0_8, %c0_9], %16 {strides = array<i32>} : memref<8x256xf32, #tpu.memory_space<vmem>>, vector<8x256xf32>,
    %c0_10 = arith.constant 0 : index
    %c0_11 = arith.constant 0 : index
    %18 = vector.load %arg10[%c0_10, %c0_11] : memref<8x256xf32, #tpu.memory_space<vmem>>, vector<8x256xf32>
    %19 = arith.addf %18, %7 : vector<8x256xf32>
    %c0_12 = arith.constant 0 : index
    %c0_13 = arith.constant 0 : index
    %20 = vector.load %arg10[%c0_12, %c0_13] : memref<8x256xf32, #tpu.memory_space<vmem>>, vector<8x256xf32>
    tpu.vector_store %arg10[%c0_12, %c0_13], %19 {strides = array<i32>} : memref<8x256xf32, #tpu.memory_space<vmem>>, vector<8x256xf32>,
    %c0_14 = arith.constant 0 : index
    %c0_15 = arith.constant 0 : index
    %21 = vector.load %arg11[%c0_14, %c0_15] : memref<8x256xf32, #tpu.memory_space<vmem>>, vector<8x256xf32>
    %22 = arith.addf %21, %8 : vector<8x256xf32>
    %c0_16 = arith.constant 0 : index
    %c0_17 = arith.constant 0 : index
    %23 = vector.load %arg11[%c0_16, %c0_17] : memref<8x256xf32, #tpu.memory_space<vmem>>, vector<8x256xf32>
    tpu.vector_store %arg11[%c0_16, %c0_17], %22 {strides = array<i32>} : memref<8x256xf32, #tpu.memory_space<vmem>>, vector<8x256xf32>,
    %c7_i32 = arith.constant 7 : i32
    %24 = arith.cmpi eq, %arg0, %c7_i32 : i32
    %25 = arith.extui %24 : i1 to i32
    %c0_i32_18 = arith.constant 0 : i32
    %26 = arith.cmpi ne, %25, %c0_i32_18 : i32
    scf.if %26 {
      %c0_19 = arith.constant 0 : index
      %c0_20 = arith.constant 0 : index
      %27 = vector.load %arg10[%c0_19, %c0_20] : memref<8x256xf32, #tpu.memory_space<vmem>>, vector<8x256xf32>
      %28 = vector.shape_cast %27 : vector<8x256xf32> to vector<1x8x256xf32>
      %cst = arith.constant dense<0.000000e+00> : vector<1xf32>
      %29 = vector.multi_reduction <add>, %28, %cst [1, 2] : vector<1x8x256xf32> to vector<1xf32>
      %30 = vector.shape_cast %29 : vector<1xf32> to vector<1x1x1xf32>
      %31 = vector.extract %30[0, 0, 0] : f32 from vector<1x1x1xf32>
      %cst_21 = arith.constant 6.10351563E-5 : f32
      %32 = arith.mulf %31, %cst_21 : f32
      %33 = arith.mulf %5, %32 : f32
      %34 = arith.addf %33, %3 : f32
      %c0_22 = arith.constant 0 : index
      %35 = memref.load %arg8[%c0_22] : memref<1xf32, #tpu.memory_space<smem>>
      memref.store %34, %arg8[%c0_22] : memref<1xf32, #tpu.memory_space<smem>>
      %c0_23 = arith.constant 0 : index
      %c0_24 = arith.constant 0 : index
      %36 = vector.load %arg11[%c0_23, %c0_24] : memref<8x256xf32, #tpu.memory_space<vmem>>, vector<8x256xf32>
      %37 = vector.shape_cast %36 : vector<8x256xf32> to vector<1x8x256xf32>
      %cst_25 = arith.constant dense<0.000000e+00> : vector<1xf32>
      %38 = vector.multi_reduction <add>, %37, %cst_25 [1, 2] : vector<1x8x256xf32> to vector<1xf32>
      %39 = vector.shape_cast %38 : vector<1xf32> to vector<1x1x1xf32>
      %40 = vector.extract %39[0, 0, 0] : f32 from vector<1x1x1xf32>
      %cst_26 = arith.constant 6.10351563E-5 : f32
      %41 = arith.mulf %40, %cst_26 : f32
      %42 = arith.mulf %6, %41 : f32
      %43 = arith.addf %42, %4 : f32
      %c0_27 = arith.constant 0 : index
      %44 = memref.load %arg9[%c0_27] : memref<1xf32, #tpu.memory_space<smem>>
      memref.store %43, %arg9[%c0_27] : memref<1xf32, #tpu.memory_space<smem>>
    } else {
    }
    return
  }
  func.func @transform_0(%arg0: i32) -> i32 {
    %c0_i32 = arith.constant 0 : i32
    %c0_i32_0 = arith.constant 0 : i32
    return %c0_i32 : i32
  }
  func.func @transform_1(%arg0: i32) -> i32 {
    %c0_i32 = arith.constant 0 : i32
    %c0_i32_0 = arith.constant 0 : i32
    return %c0_i32 : i32
  }
  func.func @transform_2(%arg0: i32) -> i32 {
    %c0_i32 = arith.constant 0 : i32
    %c0_i32_0 = arith.constant 0 : i32
    return %c0_i32 : i32
  }
  func.func @transform_3(%arg0: i32) -> i32 {
    %c0_i32 = arith.constant 0 : i32
    %c0_i32_0 = arith.constant 0 : i32
    return %c0_i32 : i32
  }
  func.func @transform_4(%arg0: i32) -> (i32, i32) {
    %c0_i32 = arith.constant 0 : i32
    %c0_i32_0 = arith.constant 0 : i32
    return %arg0, %c0_i32 : i32, i32
  }
  func.func @transform_5(%arg0: i32) -> (i32, i32) {
    %c0_i32 = arith.constant 0 : i32
    %c0_i32_0 = arith.constant 0 : i32
    return %arg0, %c0_i32 : i32, i32
  }
  func.func @transform_6(%arg0: i32) -> (i32, i32) {
    %c0_i32 = arith.constant 0 : i32
    %c0_i32_0 = arith.constant 0 : i32
    return %arg0, %c0_i32 : i32, i32
  }
  func.func @transform_7(%arg0: i32) -> i32 {
    %c0_i32 = arith.constant 0 : i32
    %c0_i32_0 = arith.constant 0 : i32
    return %c0_i32 : i32
  }
  func.func @transform_8(%arg0: i32) -> i32 {
    %c0_i32 = arith.constant 0 : i32
    %c0_i32_0 = arith.constant 0 : i32
    return %c0_i32 : i32
  }
}

</mosaic_0001>

<llo_original>
// kernel: tpu_custom_call.1
$region0: #{tpu_custom_call.1}
  #allocation0 [shape = 'u32[]', space=smem, size = 0x4, offset = 0x4, fixed_abs, tag = 'smem constant byte address 0x4 - core index']
  #allocation1 [shape = 'u32[144,128]{1,0:T(1,128)}', space=vmem, size = 0x12000, scoped, tag = 'internal scratch']
  #allocation2 [shape = 'f32[8,256]{1,0:T(8,128)}', space=vmem, size = 0x2000, scoped, tag = 'scratch operand']
  #allocation3 [shape = 'f32[8,256]{1,0:T(8,128)}', space=vmem, size = 0x2000, scoped, tag = 'scratch operand']
  #allocation4 [shape = 'f32[1]{0:T(128)S(6)}', space=smem, size = 0x200, scoped, tag = 'scoped memory for tpu_custom_call.1']
  #allocation5 [shape = 'f32[1]{0:T(128)S(6)}', space=smem, size = 0x200, scoped, tag = 'scoped memory for tpu_custom_call.1']
  #allocation6 [shape = 'f32[1]{0:T(128)S(6)}', space=smem, size = 0x200, scoped, tag = 'scoped memory for tpu_custom_call.1']
  #allocation7 [shape = 'f32[1]{0:T(128)S(6)}', space=smem, size = 0x200, scoped, tag = 'scoped memory for tpu_custom_call.1']
  %s0 = inlined_call_operand.<no memory space> [shape: f32[1], index: 0, kind: input, shape index: {}]
  %s1 = inlined_call_operand.<no memory space> [shape: f32[1], index: 1, kind: input, shape index: {}]
  %s2 = inlined_call_operand.<no memory space> [shape: f32[1], index: 2, kind: input, shape index: {}]
  %s3 = inlined_call_operand.<no memory space> [shape: f32[1], index: 3, kind: input, shape index: {}]
  %s4 = inlined_call_operand.hbm [shape: f32[64,256], index: 4, kind: input, shape index: {}]
  %s5 = inlined_call_operand.hbm [shape: f32[64,256], index: 5, kind: input, shape index: {}]
  %s6 = inlined_call_operand.hbm [shape: f32[64,256], index: 6, kind: output, shape index: {0}]
  %s7 = inlined_call_operand.hbm [shape: f32[1], index: 7, kind: output, shape index: {1}]
  %s8 = inlined_call_operand.hbm [shape: f32[1], index: 8, kind: output, shape index: {2}]
  %9 = xla_tuple %s6, %s7, %s8
  %s10 = sld [smem:[#allocation0]]
  $region89: #{tpu_custom_call.1} parent=0
    _
  %s12 = ssub.s32 1, %s10
  %s13 = scalar_select 0, %s12, %s10
  %14 = sst [smem:[#allocation4]] %s0
  %15 = sst [smem:[#allocation5]] %s1
  %16 = sst [smem:[#allocation6]] %s2
  %17 = sst [smem:[#allocation7]] %s3
  $region1: #{tpu_custom_call.1} parent=0
    #allocation8 [shape = 'u8[16384]{0}', space=vmem, size = 0x4000, scoped, tag = 'input window, operand 4']
    #allocation9 [shape = 's32[2]{0}', space=sflag, size = 0x8, scoped, tag = 'scoped memory for tpu_custom_call.1']
    #allocation10 [shape = 's32[2]{0}', space=sflag, size = 0x8, scoped, tag = 'scoped memory for tpu_custom_call.1']
    #allocation11 [shape = 's32[2]{0}', space=sflag, size = 0x8, scoped, tag = 'scoped memory for tpu_custom_call.1']
    #allocation12 [shape = 'u8[16384]{0}', space=vmem, size = 0x4000, scoped, tag = 'input window, operand 5']
    #allocation13 [shape = 's32[2]{0}', space=sflag, size = 0x8, scoped, tag = 'scoped memory for tpu_custom_call.1']
    #allocation14 [shape = 'u8[16384]{0}', space=vmem, size = 0x4000, scoped, tag = 'output window, operand 0']
    #allocation15 [shape = 'u8[512]{0}', space=smem, size = 0x200, scoped, tag = 'output window, operand 1, single buffered']
    #allocation16 [shape = 'u8[512]{0}', space=smem, size = 0x200, scoped, tag = 'output window, operand 2, single buffered']
    #allocation17 [shape = 's32[1]{0}', space=sflag, size = 0x4, scoped, tag = 'scoped memory for tpu_custom_call.1']
    %18 = vsyncpa [#allocation9], 0
    %s19 = scalar_lea.sflag [#allocation9], 1
    %20 = vsyncpa %s19, 0
    %21 = vsyncpa [#allocation13], 0
    %s22 = scalar_lea.sflag [#allocation13], 1
    %23 = vsyncpa %s22, 0
    %24 = vsyncpa [#allocation10], 0
    %s25 = scalar_lea.sflag [#allocation10], 1
    %26 = vsyncpa %s25, 0
    %27 = vsyncpa [#allocation11], 0
    %28 = vsyncpa [#allocation17], 0
    loop: start=0, step=1, limit=10
    $region2: #{tpu_custom_call.1} parent=1 // loop_pre_header
      _
    $region3: #{tpu_custom_call.1} parent=1 // loop_header
      %s30 = sphi 0, %s34
      %p31 = scmp.ge.s32.totalorder %s30, 10
      %s38 = sphi 0, %s38
      %s40 = sphi 0, %s38
      %s41 = sphi 0, %s40
      %s55 = sphi 0, %s41
      %s59 = sphi 0, %s59
      %s61 = sphi 0, %s59
      %s62 = sphi 0, %s61
      %s76 = sphi 0, %s62
      %s80 = sphi 0, %s80
      %s82 = sphi 0, %s80
      %s83 = sphi 0, %s82
      %s97 = sphi 0, %s83
      %s101 = sphi 0, %s101
      %s103 = sphi 0, %s101
      %s104 = sphi 0, %s103
      %s118 = sphi 0, %s104
      %s124 = sphi 0, %s126
      %s127 = sphi 0, %s124
      %s128 = sphi 0, %s127
      %s144 = sphi 0, %s128
      %s150 = sphi 0, %s152
      %s153 = sphi 0, %s150
      %s154 = sphi 0, %s153
      %s170 = sphi 0, %s154
      %s176 = sphi 0, %s178
      %s179 = sphi 0, %s176
      %s180 = sphi 0, %s179
      %s196 = sphi 0, %s180
      %s200 = sphi 0, %s200
      %s202 = sphi 0, %s200
      %s203 = sphi 0, %s202
      %s217 = sphi 0, %s203
      %s221 = sphi 0, %s221
      %s223 = sphi 0, %s221
      %s224 = sphi 0, %s223
      %s238 = sphi 0, %s224
    $region4: #{tpu_custom_call.1} parent=1 // loop_header_branch
      %33 = sbr.rel (%p31) target = $region8
    $region5: #{tpu_custom_call.1} parent=1 // loop_body
      %s35 = ssub.s32 %s30, 1
      %s36 = ssub.s32 %s30, 2
      %s37 = sadd.s32 %s30, 1
      %s39 = sadd.s32 %s38, 1
      %p42 = scmp.eq.s32.totalorder %s30, 7
      %p43 = scmp.ne.s32.totalorder %s38, %s40
      %p44 = scmp.eq.s32.totalorder %s30, 0
      %p45 = por %p43, %p44
      %p46 = scmp.ne.s32.totalorder %s38, %s40
      %p47 = scmp.eq.s32.totalorder %s35, 7
      %p48 = por %p46, %p47
      %p49 = scmp.ne.s32.totalorder %s40, %s41
      %p50 = scmp.eq.s32.totalorder %s35, 0
      %p51 = por %p49, %p50
      %p52 = scmp.ne.s32.totalorder %s40, %s41
      %p53 = scmp.eq.s32.totalorder %s36, 7
      %p54 = por %p52, %p53
      %p56 = scmp.ne.s32.totalorder %s41, %s55
      %p57 = scmp.eq.s32.totalorder %s36, 0
      %p58 = por %p56, %p57
      %s60 = sadd.s32 %s59, 1
      %p63 = scmp.eq.s32.totalorder %s30, 7
      %p64 = scmp.ne.s32.totalorder %s59, %s61
      %p65 = scmp.eq.s32.totalorder %s30, 0
      %p66 = por %p64, %p65
      %p67 = scmp.ne.s32.totalorder %s59, %s61
      %p68 = scmp.eq.s32.totalorder %s35, 7
      %p69 = por %p67, %p68
      %p70 = scmp.ne.s32.totalorder %s61, %s62
      %p71 = scmp.eq.s32.totalorder %s35, 0
      %p72 = por %p70, %p71
      %p73 = scmp.ne.s32.totalorder %s61, %s62
      %p74 = scmp.eq.s32.totalorder %s36, 7
      %p75 = por %p73, %p74
      %p77 = scmp.ne.s32.totalorder %s62, %s76
      %p78 = scmp.eq.s32.totalorder %s36, 0
      %p79 = por %p77, %p78
      %s81 = sadd.s32 %s80, 1
      %p84 = scmp.eq.s32.totalorder %s30, 7
      %p85 = scmp.ne.s32.totalorder %s80, %s82
      %p86 = scmp.eq.s32.totalorder %s30, 0
      %p87 = por %p85, %p86
      %p88 = scmp.ne.s32.totalorder %s80, %s82
      %p89 = scmp.eq.s32.totalorder %s35, 7
      %p90 = por %p88, %p89
      %p91 = scmp.ne.s32.totalorder %s82, %s83
      %p92 = scmp.eq.s32.totalorder %s35, 0
      %p93 = por %p91, %p92
      %p94 = scmp.ne.s32.totalorder %s82, %s83
      %p95 = scmp.eq.s32.totalorder %s36, 7
      %p96 = por %p94, %p95
      %p98 = scmp.ne.s32.totalorder %s83, %s97
      %p99 = scmp.eq.s32.totalorder %s36, 0
      %p100 = por %p98, %p99
      %s102 = sadd.s32 %s101, 1
      %p105 = scmp.eq.s32.totalorder %s30, 7
      %p106 = scmp.ne.s32.totalorder %s101, %s103
      %p107 = scmp.eq.s32.totalorder %s30, 0
      %p108 = por %p106, %p107
      %p109 = scmp.ne.s32.totalorder %s101, %s103
      %p110 = scmp.eq.s32.totalorder %s35, 7
      %p111 = por %p109, %p110
      %p112 = scmp.ne.s32.totalorder %s103, %s104
      %p113 = scmp.eq.s32.totalorder %s35, 0
      %p114 = por %p112, %p113
      %p115 = scmp.ne.s32.totalorder %s103, %s104
      %p116 = scmp.eq.s32.totalorder %s36, 7
      %p117 = por %p115, %p116
      %p119 = scmp.ne.s32.totalorder %s104, %s118
      %p120 = scmp.eq.s32.totalorder %s36, 0
      %p121 = por %p119, %p120
      %s122 = ssub.s32 %s30, %s37
      %p123 = scmp.eq.s32.totalorder %s122, 0
      %s125 = sadd.s32 %s124, 1
      %s126 = scalar_select %p123, %s124, %s125
      %p129 = pneg %p123
      %p130 = scmp.eq.s32.totalorder %s30, 7
      %p131 = por %p129, %p130
      %p132 = scmp.ne.s32.totalorder %s124, %s127
      %p133 = scmp.eq.s32.totalorder %s30, 0
      %p134 = por %p132, %p133
      %p135 = scmp.ne.s32.totalorder %s124, %s127
      %p136 = scmp.eq.s32.totalorder %s35, 7
      %p137 = por %p135, %p136
      %p138 = scmp.ne.s32.totalorder %s127, %s128
      %p139 = scmp.eq.s32.totalorder %s35, 0
      %p140 = por %p138, %p139
      %p141 = scmp.ne.s32.totalorder %s127, %s128
      %p142 = scmp.eq.s32.totalorder %s36, 7
      %p143 = por %p141, %p142
      %p145 = scmp.ne.s32.totalorder %s128, %s144
      %p146 = scmp.eq.s32.totalorder %s36, 0
      %p147 = por %p145, %p146
      %s148 = ssub.s32 %s30, %s37
      %p149 = scmp.eq.s32.totalorder %s148, 0
      %s151 = sadd.s32 %s150, 1
      %s152 = scalar_select %p149, %s150, %s151
      %p155 = pneg %p149
      %p156 = scmp.eq.s32.totalorder %s30, 7
      %p157 = por %p155, %p156
      %p158 = scmp.ne.s32.totalorder %s150, %s153
      %p159 = scmp.eq.s32.totalorder %s30, 0
      %p160 = por %p158, %p159
      %p161 = scmp.ne.s32.totalorder %s150, %s153
      %p162 = scmp.eq.s32.totalorder %s35, 7
      %p163 = por %p161, %p162
      %p164 = scmp.ne.s32.totalorder %s153, %s154
      %p165 = scmp.eq.s32.totalorder %s35, 0
      %p166 = por %p164, %p165
      %p167 = scmp.ne.s32.totalorder %s153, %s154
      %p168 = scmp.eq.s32.totalorder %s36, 7
      %p169 = por %p167, %p168
      %p171 = scmp.ne.s32.totalorder %s154, %s170
      %p172 = scmp.eq.s32.totalorder %s36, 0
      %p173 = por %p171, %p172
      %s174 = ssub.s32 %s30, %s37
      %p175 = scmp.eq.s32.totalorder %s174, 0
      %s177 = sadd.s32 %s176, 1
      %s178 = scalar_select %p175, %s176, %s177
      %p181 = pneg %p175
      %p182 = scmp.eq.s32.totalorder %s30, 7
      %p183 = por %p181, %p182
      %p184 = scmp.ne.s32.totalorder %s176, %s179
      %p185 = scmp.eq.s32.totalorder %s30, 0
      %p186 = por %p184, %p185
      %p187 = scmp.ne.s32.totalorder %s176, %s179
      %p188 = scmp.eq.s32.totalorder %s35, 7
      %p189 = por %p187, %p188
      %p190 = scmp.ne.s32.totalorder %s179, %s180
      %p191 = scmp.eq.s32.totalorder %s35, 0
      %p192 = por %p190, %p191
      %p193 = scmp.ne.s32.totalorder %s179, %s180
      %p194 = scmp.eq.s32.totalorder %s36, 7
      %p195 = por %p193, %p194
      %p197 = scmp.ne.s32.totalorder %s180, %s196
      %p198 = scmp.eq.s32.totalorder %s36, 0
      %p199 = por %p197, %p198
      %s201 = sadd.s32 %s200, 1
      %p204 = scmp.eq.s32.totalorder %s30, 7
      %p205 = scmp.ne.s32.totalorder %s200, %s202
      %p206 = scmp.eq.s32.totalorder %s30, 0
      %p207 = por %p205, %p206
      %p208 = scmp.ne.s32.totalorder %s200, %s202
      %p209 = scmp.eq.s32.totalorder %s35, 7
      %p210 = por %p208, %p209
      %p211 = scmp.ne.s32.totalorder %s202, %s203
      %p212 = scmp.eq.s32.totalorder %s35, 0
      %p213 = por %p211, %p212
      %p214 = scmp.ne.s32.totalorder %s202, %s203
      %p215 = scmp.eq.s32.totalorder %s36, 7
      %p216 = por %p214, %p215
      %p218 = scmp.ne.s32.totalorder %s203, %s217
      %p219 = scmp.eq.s32.totalorder %s36, 0
      %p220 = por %p218, %p219
      %s222 = sadd.s32 %s221, 1
      %p225 = scmp.eq.s32.totalorder %s30, 7
      %p226 = scmp.ne.s32.totalorder %s221, %s223
      %p227 = scmp.eq.s32.totalorder %s30, 0
      %p228 = por %p226, %p227
      %p229 = scmp.ne.s32.totalorder %s221, %s223
      %p230 = scmp.eq.s32.totalorder %s35, 7
      %p231 = por %p229, %p230
      %p232 = scmp.ne.s32.totalorder %s223, %s224
      %p233 = scmp.eq.s32.totalorder %s35, 0
      %p234 = por %p232, %p233
      %p235 = scmp.ne.s32.totalorder %s223, %s224
      %p236 = scmp.eq.s32.totalorder %s36, 7
      %p237 = por %p235, %p236
      %p239 = scmp.ne.s32.totalorder %s224, %s238
      %p240 = scmp.eq.s32.totalorder %s36, 0
      %p241 = por %p239, %p240
      %p242 = scmp.le.s32.totalorder 1, %s30
      %p243 = scmp.lt.s32.totalorder %s30, 9
      %p244 = pnand %p242, %p243
      %p245 = pneg %p244
      // Predicated region
      $region9: #{tpu_custom_call.1} parent=5 // pred_check
        _
      $region10: #{tpu_custom_call.1} parent=5 // pred_check_branch
        %247 = sbr.rel (%p244) target = $region12
      $region11: #{tpu_custom_call.1} parent=5 // pred_region
        %s248 = ssub.s32 %s30, 1
        // Predicated region
        $region13: #{tpu_custom_call.1} parent=11 // pred_check
          %p249 = pneg %p51
        $region14: #{tpu_custom_call.1} parent=11 // pred_check_branch
          %251 = sbr.rel (%p249) target = $region16
        $region15: #{tpu_custom_call.1} parent=11 // pred_region
          _
        $region16: #{tpu_custom_call.1} parent=11 // pred_fallthru
          _
        // Predicated region
        $region17: #{tpu_custom_call.1} parent=11 // pred_check
          %p252 = pneg %p72
        $region18: #{tpu_custom_call.1} parent=11 // pred_check_branch
          %254 = sbr.rel (%p252) target = $region20
        $region19: #{tpu_custom_call.1} parent=11 // pred_region
          _
        $region20: #{tpu_custom_call.1} parent=11 // pred_fallthru
          _
        // Predicated region
        $region21: #{tpu_custom_call.1} parent=11 // pred_check
          %p255 = pneg %p93
        $region22: #{tpu_custom_call.1} parent=11 // pred_check_branch
          %257 = sbr.rel (%p255) target = $region24
        $region23: #{tpu_custom_call.1} parent=11 // pred_region
          _
        $region24: #{tpu_custom_call.1} parent=11 // pred_fallthru
          _
        // Predicated region
        $region25: #{tpu_custom_call.1} parent=11 // pred_check
          %p258 = pneg %p114
        $region26: #{tpu_custom_call.1} parent=11 // pred_check_branch
          %260 = sbr.rel (%p258) target = $region28
        $region27: #{tpu_custom_call.1} parent=11 // pred_region
          _
        $region28: #{tpu_custom_call.1} parent=11 // pred_fallthru
          _
      $region12: #{tpu_custom_call.1} parent=5 // pred_fallthru
        _
      %p261 = scmp.lt.s32.totalorder %s30, 8
      // Predicated region
      $region29: #{tpu_custom_call.1} parent=5 // pred_check
        %p262 = pneg %p261
      $region30: #{tpu_custom_call.1} parent=5 // pred_check_branch
        %264 = sbr.rel (%p262) target = $region32
      $region31: #{tpu_custom_call.1} parent=5 // pred_region
        // Predicated region
        $region33: #{tpu_custom_call.1} parent=31 // pred_check
          %p265 = pneg %p134
        $region34: #{tpu_custom_call.1} parent=31 // pred_check_branch
          %267 = sbr.rel (%p265) target = $region36
        $region35: #{tpu_custom_call.1} parent=31 // pred_region
          %s268 = sand.u32 %s124, 1
          %s269 = scalar_lea.sflag [#allocation9], %s268
          %s270 = sand.u32 %s124, 1
          %s271 = smul.addr %s270, 16
          %s272 = scalar_lea.vmem [#allocation8], %s271
          %s274 = ssub.s32 256, 256
          %275 = vsyncadd %s269, %s274
          %s276 = smul.addr %s30, 2
          %s277 = smul.addr %s276, 128
          %s278 = scalar_lea.hbm %s4, %s277
          %s280 = sshll.u32 %s272, 4
          %s281 = int_to_ptr.vmem [resolvable:$true] %s280
          %283 = dma.hbm_to_vmem [thread:$0]  %s278, 256, %s281, %s269
        $region36: #{tpu_custom_call.1} parent=31 // pred_fallthru
          _
        // Predicated region
        $region37: #{tpu_custom_call.1} parent=31 // pred_check
          %p284 = pneg %p160
        $region38: #{tpu_custom_call.1} parent=31 // pred_check_branch
          %286 = sbr.rel (%p284) target = $region40
        $region39: #{tpu_custom_call.1} parent=31 // pred_region
          %s287 = sand.u32 %s150, 1
          %s288 = scalar_lea.sflag [#allocation13], %s287
          %s289 = sand.u32 %s150, 1
          %s290 = smul.addr %s289, 16
          %s291 = scalar_lea.vmem [#allocation12], %s290
          %s293 = ssub.s32 256, 256
          %294 = vsyncadd %s288, %s293
          %s295 = smul.addr %s30, 2
          %s296 = smul.addr %s295, 128
          %s297 = scalar_lea.hbm %s5, %s296
          %s299 = sshll.u32 %s291, 4
          %s300 = int_to_ptr.vmem [resolvable:$true] %s299
          %302 = dma.hbm_to_vmem [thread:$0]  %s297, 256, %s300, %s288
        $region40: #{tpu_custom_call.1} parent=31 // pred_fallthru
          _
      $region32: #{tpu_custom_call.1} parent=5 // pred_fallthru
        _
      %p303 = scmp.le.s32.totalorder 1, %s30
      %p304 = scmp.lt.s32.totalorder %s30, 9
      %p305 = pnand %p303, %p304
      %p306 = pneg %p305
      // Predicated region
      $region41: #{tpu_custom_call.1} parent=5 // pred_check
        _
      $region42: #{tpu_custom_call.1} parent=5 // pred_check_branch
        %308 = sbr.rel (%p305) target = $region44
      $region43: #{tpu_custom_call.1} parent=5 // pred_region
        %s309 = ssub.s32 %s30, 1
        %s310 = sand.u32 %s127, 1
        %s311 = scalar_lea.sflag [#allocation9], %s310
        %s312 = sand.u32 %s127, 1
        %s313 = smul.addr %s312, 16
        %s314 = scalar_lea.vmem [#allocation8], %s313
        // Predicated region
        $region45: #{tpu_custom_call.1} parent=43 // pred_check
          %p315 = pneg %p140
        $region46: #{tpu_custom_call.1} parent=43 // pred_check_branch
          %317 = sbr.rel (%p315) target = $region48
        $region47: #{tpu_custom_call.1} parent=43 // pred_region
          %318 = dma.done %s311, 256
        $region48: #{tpu_custom_call.1} parent=43 // pred_fallthru
          _
        %s319 = sand.u32 %s153, 1
        %s320 = scalar_lea.sflag [#allocation13], %s319
        %s321 = sand.u32 %s153, 1
        %s322 = smul.addr %s321, 16
        %s323 = scalar_lea.vmem [#allocation12], %s322
        // Predicated region
        $region49: #{tpu_custom_call.1} parent=43 // pred_check
          %p324 = pneg %p166
        $region50: #{tpu_custom_call.1} parent=43 // pred_check_branch
          %326 = sbr.rel (%p324) target = $region52
        $region51: #{tpu_custom_call.1} parent=43 // pred_region
          %327 = dma.done %s320, 256
        $region52: #{tpu_custom_call.1} parent=43 // pred_fallthru
          _
        %p328 = pneg %p51
        %p329 = pneg %p48
        %p330 = pneg %p72
        %p331 = pneg %p69
        %p332 = pneg %p93
        %p333 = pneg %p90
        %p334 = pneg %p114
        %p335 = pneg %p111
        %s336 = sand.u32 %s127, 1
        %s337 = scalar_lea.sflag [#allocation9], %s336
        %s338 = sand.u32 %s127, 1
        %s339 = smul.addr %s338, 16
        %s340 = scalar_lea.vmem [#allocation8], %s339
        %p341 = pneg %p140
        %p342 = pneg %p137
        %s343 = sand.u32 %s153, 1
        %s344 = scalar_lea.sflag [#allocation13], %s343
        %s345 = sand.u32 %s153, 1
        %s346 = smul.addr %s345, 16
        %s347 = scalar_lea.vmem [#allocation12], %s346
        %p348 = pneg %p166
        %p349 = pneg %p163
        %p350 = pneg %p192
        %p351 = pneg %p189
        %s352 = sand.u32 %s179, 1
        %s353 = scalar_lea.sflag [#allocation10], %s352
        %s354 = sand.u32 %s179, 1
        %s355 = smul.addr %s354, 16
        %s356 = scalar_lea.vmem [#allocation14], %s355
        %p357 = pneg %p213
        %p358 = pneg %p210
        %p359 = pneg %p234
        %p360 = pneg %p231
        %p361 = scmp.eq.s32.totalorder %s35, 0
        // Predicated region
        $region53: #{tpu_custom_call.1} parent=43 // pred_check
          %p362 = pneg %p361
        $region54: #{tpu_custom_call.1} parent=43 // pred_check_branch
          %364 = sbr.rel (%p362) target = $region56
        $region55: #{tpu_custom_call.1} parent=43 // pred_region
          %365 = vst [vmem:[#allocation2] sm:$0xff] 0.0
          %366 = vst [vmem:[#allocation2 + $0x8] sm:$0xff] 0.0
          %367 = vst [vmem:[#allocation3] sm:$0xff] 0.0
          %368 = vst [vmem:[#allocation3 + $0x8] sm:$0xff] 0.0
        $region56: #{tpu_custom_call.1} parent=43 // pred_fallthru
          _
        %s369 = sld [smem:[#allocation4]]
        %s370 = sld [smem:[#allocation5]]
        %s371 = sld [smem:[#allocation6]]
        %s372 = sld [smem:[#allocation7]]
        %v373 = vld [vmem:[%s314] sm:$0xff]
        %v374 = vld [vmem:[%s314 + $0x8] sm:$0xff]
        %v375 = vld [vmem:[%s323] sm:$0xff]
        %v376 = vld [vmem:[%s323 + $0x8] sm:$0xff]
        %v377 = vstv %s371
        %v378 = vmul.f32 %v377, %v373
        %v379 = vmul.f32 %v377, %v374
        %v380 = vstv %s372
        %v381 = vmul.f32 %v380, %v375
        %v382 = vmul.f32 %v380, %v376
        %v383 = vadd.f32 %v378, %v381
        %v384 = vadd.f32 %v379, %v382
        %s385 = sadd.f32 %s369, %s370
        %v386 = vstv %s385
        %v387 = vadd.f32 %v383, %v386
        %v388 = vadd.f32 %v384, %v386
        %389 = vst [vmem:[%s356] sm:$0xff] %v387
        %390 = vst [vmem:[%s356 + $0x8] sm:$0xff] %v388
        %v391 = vld [vmem:[#allocation2] sm:$0xff]
        %v392 = vld [vmem:[#allocation2 + $0x8] sm:$0xff]
        %v393 = vadd.f32 %v391, %v373
        %v394 = vadd.f32 %v392, %v374
        %395 = vst [vmem:[#allocation2] sm:$0xff] %v393
        %396 = vst [vmem:[#allocation2 + $0x8] sm:$0xff] %v394
        %v397 = vld [vmem:[#allocation3] sm:$0xff]
        %v398 = vld [vmem:[#allocation3 + $0x8] sm:$0xff]
        %v399 = vadd.f32 %v397, %v375
        %v400 = vadd.f32 %v398, %v376
        %401 = vst [vmem:[#allocation3] sm:$0xff] %v399
        %402 = vst [vmem:[#allocation3 + $0x8] sm:$0xff] %v400
        %p403 = scmp.eq.s32.totalorder %s35, 7
        // Predicated region
        $region57: #{tpu_custom_call.1} parent=43 // pred_check
          %p404 = pneg %p403
        $region58: #{tpu_custom_call.1} parent=43 // pred_check_branch
          %406 = sbr.rel (%p404) target = $region60
        $region59: #{tpu_custom_call.1} parent=43 // pred_region
          %v407 = vld [vmem:[#allocation2] sm:$0xff]
          %v408 = vld [vmem:[#allocation2 + $0x8] sm:$0xff]
          %v409 = vadd.f32 %v407, %v408
          %410 = vadd.xlane.f32.xlu0 %v409
          %v411 = vpop.xlane.xlu0 %410
          %v412 = vrot.slane %v411, 4
          %v413 = vadd.f32 %v411, %v412
          %v414 = vrot.slane %v413, 2
          %v415 = vadd.f32 %v413, %v414
          %v416 = vrot.slane %v415, 1
          %v417 = vadd.f32 %v415, %v416
          %s418 = vtos %v417
          %s419 = smul.f32 %s418, 6.1035156e-05
          %s420 = smul.f32 %s371, %s419
          %s421 = sadd.f32 %s420, %s369
          %s422 = scalar_lea.smem [#allocation15], 0
          %423 = sst [smem:[%s422]] %s421
          %v424 = vld [vmem:[#allocation3] sm:$0xff]
          %v425 = vld [vmem:[#allocation3 + $0x8] sm:$0xff]
          %v426 = vadd.f32 %v424, %v425
          %427 = vadd.xlane.f32.xlu0 %v426
          %v428 = vpop.xlane.xlu0 %427
          %v429 = vrot.slane %v428, 4
          %v430 = vadd.f32 %v428, %v429
          %v431 = vrot.slane %v430, 2
          %v432 = vadd.f32 %v430, %v431
          %v433 = vrot.slane %v432, 1
          %v434 = vadd.f32 %v432, %v433
          %s435 = vtos %v434
          %s436 = smul.f32 %s435, 6.1035156e-05
          %s437 = smul.f32 %s372, %s436
          %s438 = sadd.f32 %s437, %s370
          %s439 = scalar_lea.smem [#allocation16], 0
          %440 = sst [smem:[%s439]] %s438
        $region60: #{tpu_custom_call.1} parent=43 // pred_fallthru
          _
        %s441 = sand.u32 %s179, 1
        %s442 = scalar_lea.sflag [#allocation10], %s441
        %s443 = sand.u32 %s179, 1
        %s444 = smul.addr %s443, 16
        %s445 = scalar_lea.vmem [#allocation14], %s444
        // Predicated region
        $region61: #{tpu_custom_call.1} parent=43 // pred_check
          %p446 = pneg %p189
        $region62: #{tpu_custom_call.1} parent=43 // pred_check_branch
          %448 = sbr.rel (%p446) target = $region64
        $region63: #{tpu_custom_call.1} parent=43 // pred_region
          %s450 = ssub.s32 256, 256
          %451 = vsyncadd %s442, %s450
          %s452 = smul.addr %s35, 2
          %s453 = smul.addr %s452, 128
          %s454 = scalar_lea.hbm %s6, %s453
          %s456 = sshll.u32 %s445, 4
          %s457 = int_to_ptr.vmem [resolvable:$true] %s456
          %459 = dma.vmem_to_hbm [thread:$0]  %s457, 256, %s454, %s442
        $region64: #{tpu_custom_call.1} parent=43 // pred_fallthru
          _
        // Predicated region
        $region65: #{tpu_custom_call.1} parent=43 // pred_check
          %p460 = pneg %p210
        $region66: #{tpu_custom_call.1} parent=43 // pred_check_branch
          %462 = sbr.rel (%p460) target = $region68
        $region67: #{tpu_custom_call.1} parent=43 // pred_region
          %s464 = ssub.s32 16, 16
          %465 = vsyncadd [#allocation11], %s464
          %468 = dma.smem_to_hbm [#allocation15], 16, %s7, [#allocation11]
        $region68: #{tpu_custom_call.1} parent=43 // pred_fallthru
          _
        // Predicated region
        $region69: #{tpu_custom_call.1} parent=43 // pred_check
          %p469 = pneg %p231
        $region70: #{tpu_custom_call.1} parent=43 // pred_check_branch
          %471 = sbr.rel (%p469) target = $region72
        $region71: #{tpu_custom_call.1} parent=43 // pred_region
          %s473 = ssub.s32 16, 16
          %474 = vsyncadd [#allocation17], %s473
          %477 = dma.smem_to_hbm [#allocation16], 16, %s8, [#allocation17]
        $region72: #{tpu_custom_call.1} parent=43 // pred_fallthru
          _
        // Predicated region
        $region73: #{tpu_custom_call.1} parent=43 // pred_check
          %p478 = pneg %p210
        $region74: #{tpu_custom_call.1} parent=43 // pred_check_branch
          %480 = sbr.rel (%p478) target = $region76
        $region75: #{tpu_custom_call.1} parent=43 // pred_region
          %481 = dma.done [#allocation11], 16
        $region76: #{tpu_custom_call.1} parent=43 // pred_fallthru
          _
        // Predicated region
        $region77: #{tpu_custom_call.1} parent=43 // pred_check
          %p482 = pneg %p231
        $region78: #{tpu_custom_call.1} parent=43 // pred_check_branch
          %484 = sbr.rel (%p482) target = $region80
        $region79: #{tpu_custom_call.1} parent=43 // pred_region
          %485 = dma.done [#allocation17], 16
        $region80: #{tpu_custom_call.1} parent=43 // pred_fallthru
          _
        %486 = sfence
      $region44: #{tpu_custom_call.1} parent=5 // pred_fallthru
        _
      %p487 = scmp.le.s32.totalorder 2, %s30
      // Predicated region
      $region81: #{tpu_custom_call.1} parent=5 // pred_check
        %p488 = pneg %p487
      $region82: #{tpu_custom_call.1} parent=5 // pred_check_branch
        %490 = sbr.rel (%p488) target = $region84
      $region83: #{tpu_custom_call.1} parent=5 // pred_region
        %s491 = ssub.s32 %s30, 2
        // Predicated region
        $region85: #{tpu_custom_call.1} parent=83 // pred_check
          %p492 = pneg %p195
        $region86: #{tpu_custom_call.1} parent=83 // pred_check_branch
          %494 = sbr.rel (%p492) target = $region88
        $region87: #{tpu_custom_call.1} parent=83 // pred_region
          %s495 = sand.u32 %s180, 1
          %s496 = scalar_lea.sflag [#allocation10], %s495
          %s497 = sand.u32 %s180, 1
          %s498 = smul.addr %s497, 16
          %s499 = scalar_lea.vmem [#allocation14], %s498
          %500 = dma.done %s496, 256
        $region88: #{tpu_custom_call.1} parent=83 // pred_fallthru
          _
      $region84: #{tpu_custom_call.1} parent=5 // pred_fallthru
        _
    $region6: #{tpu_custom_call.1} parent=1 // loop_footer
      %s34 = sadd.s32 1, %s30
    $region7: #{tpu_custom_call.1} parent=1 // loop_footer_branch
      %29 = sbr.rel target = $region3
    $region8: #{tpu_custom_call.1} parent=1 // loop_exit
      _
    %501 = vsyncpa [#allocation9], 1
    %s502 = scalar_lea.sflag [#allocation9], 1
    %503 = vsyncpa %s502, 1
    %504 = vsyncpa [#allocation13], 1
    %s505 = scalar_lea.sflag [#allocation13], 1
    %506 = vsyncpa %s505, 1
    %507 = vsyncpa [#allocation10], 1
    %s508 = scalar_lea.sflag [#allocation10], 1
    %509 = vsyncpa %s508, 1
    %510 = vsyncpa [#allocation11], 1
    %s511 = scalar_lea.sflag [#allocation11], 1
    %512 = vsyncpa %s511, 1
    %513 = vsyncpa [#allocation17], 1

</llo_original>
